<compile_context>
chip_gen: v7x
topology: tpu7x:2x2x1
jax: 0.10.0
libtpu: 0.0.40
codegen_flags: <defaults>
</compile_context>

<pallas_src>
import jax
import jax.numpy as jnp
import numpy as np
from jax.experimental import pallas as pl
from jax.experimental.pallas import tpu as pltpu

EPS = 1e-5  # PyTorch BatchNorm2d default eps


# --------------------------------------------------------------------------
# Kernels
# --------------------------------------------------------------------------
def _conv1_kernel(x_ref, w1_ref, b1_ref, h1_ref, stats_ref):
    """1x1 conv (as one lane-dense matmul) + per-tile BN partial stats."""
    x = x_ref[...].astype(jnp.bfloat16)                       # (TR, W*Cin)
    h = jnp.dot(x, w1_ref[...], preferred_element_type=jnp.float32) + b1_ref[...]
    h1_ref[...] = h                                           # pre-BN activation
    s = jnp.sum(h, axis=0, keepdims=True)                     # (1, W*Cmid)
    ss = jnp.sum(h * h, axis=0, keepdims=True)
    stats_ref[...] = jnp.concatenate([s, ss], axis=0)[None]   # (1, 2, W*Cmid)


def _conv3_kernel(h1_ref, sc1_ref, sh1_ref, w2_ref, b2_ref, h2_ref, stats_ref):
    """BN1 affine + ReLU + 3x3 conv as ONE matmul (H-im2col, W taps baked
    into the banded folded weight) + per-image BN2 partial stats."""
    a = jnp.maximum(h1_ref[...] * sc1_ref[...] + sh1_ref[...], 0.0)
    a = a.astype(jnp.bfloat16)                                 # (H, W*Cmid)
    H, WCmid = a.shape
    z = jnp.zeros((1, WCmid), jnp.bfloat16)
    up = jnp.concatenate([z, a[:H - 1, :]], axis=0)            # input row h-1 (dy=-1)
    dn = jnp.concatenate([a[1:, :], z], axis=0)                # input row h+1 (dy=+1)
    col = jnp.concatenate([up, a, dn], axis=1)                 # (H, 3*W*Cmid)
    h2 = jnp.dot(col, w2_ref[...], preferred_element_type=jnp.float32) + b2_ref[...]
    h2_ref[...] = h2                                           # pre-BN2, (H, W*Cout)
    s = jnp.sum(h2, axis=0, keepdims=True)
    ss = jnp.sum(h2 * h2, axis=0, keepdims=True)
    stats_ref[...] = jnp.concatenate([s, ss], axis=0)[None]    # (1, 2, W*Cout)


def _bn_relu_kernel(h2_ref, sc2_ref, sh2_ref, out_ref):
    """BN2 affine + ReLU (lane-dense elementwise)."""
    out_ref[...] = jnp.maximum(h2_ref[...] * sc2_ref[...] + sh2_ref[...], 0.0)


# --------------------------------------------------------------------------
# Host-side helpers (tiny, run once per call)
# --------------------------------------------------------------------------
def _fold_w1(w1, W):
    """(Cin, Cmid) -> block-diagonal (W*Cin, W*Cmid) for the folded layout."""
    return jnp.kron(jnp.eye(W, dtype=jnp.float32), w1.astype(jnp.float32))


def _fold_w2(w2, W):
    """(3,3,Cmid,Cout) HWIO -> (3*W*Cmid, W*Cout); W taps + W zero-padding are
    baked in as a banded (kron with shifted identities) matrix per H tap."""
    kh, kw, cmid, cout = w2.shape
    w2 = w2.astype(jnp.float32)
    blocks = []
    for kh_i in range(kh):
        m = jnp.zeros((W * cmid, W * cout), jnp.float32)
        for kw_i in range(kw):
            dx = kw_i - (kw // 2)
            m = m + jnp.kron(jnp.eye(W, k=-dx, dtype=jnp.float32), w2[kh_i, kw_i])
        blocks.append(m)
    return jnp.concatenate(blocks, axis=0)


def _bn_affine(stats, W, C, count, gamma, beta):
    """Finalize per-channel BN (training-mode, biased var) from per-tile
    (sum, sumsq) partials; return folded (1, W*C) scale/shift vectors."""
    s = stats[:, 0, :].reshape(-1, W, C).sum(axis=(0, 1))
    ss = stats[:, 1, :].reshape(-1, W, C).sum(axis=(0, 1))
    mean = s / count
    var = jnp.maximum(ss / count - mean * mean, 0.0)
    scale = gamma.reshape(-1) * jax.lax.rsqrt(var + EPS)
    shift = beta.reshape(-1) - mean * scale
    return jnp.tile(scale, W)[None, :], jnp.tile(shift, W)[None, :]


def _pick_tile(rows):
    for t in (512, 256, 128, 64, 32, 16, 8):
        if rows % t == 0 and rows // t >= 2:
            return t
    return rows


# --------------------------------------------------------------------------
# Forward
# --------------------------------------------------------------------------
def double_conv_forward(x_nchw, params):
    """x_nchw: (N, in_ch+mid_ch, H, W) f32 -> (N, out_ch, H, W) f32."""
    x = jnp.transpose(x_nchw, (0, 2, 3, 1)).astype(jnp.float32)   # NCHW -> NHWC
    N, H, W, cin = x.shape
    mid = params["w1"].shape[1]
    cout = params["w2"].shape[3]
    NH = N * H
    WCin, WCmid, WCout = W * cin, W * mid, W * cout

    # Folded weights / biases (tiny, built once).
    w1f = _fold_w1(params["w1"], W).astype(jnp.bfloat16)           # (W*Cin, W*Cmid)
    w2f = _fold_w2(params["w2"], W).astype(jnp.bfloat16)           # (3*W*Cmid, W*Cout)
    b1f = jnp.tile(params["b1"].astype(jnp.float32), (1, W))       # (1, W*Cmid)
    b2f = jnp.tile(params["b2"].astype(jnp.float32), (1, W))       # (1, W*Cout)

    x_fold = x.reshape(NH, WCin)                                   # lane-dense (128 lanes)

    TR = _pick_tile(NH)
    T1 = NH // TR
    cp = pltpu.CompilerParams(dimension_semantics=("parallel",),
                              vmem_limit_bytes=32 * 1024 * 1024)

    # -------- pass 1: 1x1 conv + BN1 partial stats (grid over row tiles) ----
    h1, st1 = pl.pallas_call(
        _conv1_kernel,
        grid=(T1,),
        in_specs=(pl.BlockSpec((TR, WCin), lambda i: (i, 0)),
                  pl.BlockSpec((WCin, WCmid), lambda i: (0, 0)),
                  pl.BlockSpec((1, WCmid), lambda i: (0, 0))),
        out_specs=(pl.BlockSpec((TR, WCmid), lambda i: (i, 0)),
                   pl.BlockSpec((1, 2, WCmid), lambda i: (i, 0, 0))),
        out_shape=(jax.ShapeDtypeStruct((NH, WCmid), jnp.float32),
                   jax.ShapeDtypeStruct((T1, 2, WCmid), jnp.float32)),
        compiler_params=cp,
    )(x_fold, w1f, b1f)

    sc1, sh1 = _bn_affine(st1, W, mid, N * H * W, params["g1"], params["bt1"])

    # -------- pass 2: BN1+ReLU + 3x3 conv + BN2 partial stats (grid over N) --
    h2, st2 = pl.pallas_call(
        _conv3_kernel,
        grid=(N,),
        in_specs=(pl.BlockSpec((H, WCmid), lambda n: (n, 0)),
                  pl.BlockSpec((1, WCmid), lambda n: (0, 0)),
                  pl.BlockSpec((1, WCmid), lambda n: (0, 0)),
                  pl.BlockSpec((3 * WCmid, WCout), lambda n: (0, 0)),
                  pl.BlockSpec((1, WCout), lambda n: (0, 0))),
        out_specs=(pl.BlockSpec((H, WCout), lambda n: (n, 0)),
                   pl.BlockSpec((1, 2, WCout), lambda n: (n, 0, 0))),
        out_shape=(jax.ShapeDtypeStruct((NH, WCout), jnp.float32),
                   jax.ShapeDtypeStruct((N, 2, WCout), jnp.float32)),
        compiler_params=cp,
    )(h1, sc1, sh1, w2f, b2f)

    sc2, sh2 = _bn_affine(st2, W, cout, N * H * W, params["g2"], params["bt2"])

    # -------- pass 3: BN2 + ReLU (grid over row tiles) -----------------------
    out_fold = pl.pallas_call(
        _bn_relu_kernel,
        grid=(T1,),
        in_specs=(pl.BlockSpec((TR, WCout), lambda i: (i, 0)),
                  pl.BlockSpec((1, WCout), lambda i: (0, 0)),
                  pl.BlockSpec((1, WCout), lambda i: (0, 0))),
        out_specs=pl.BlockSpec((TR, WCout), lambda i: (i, 0)),
        out_shape=jax.ShapeDtypeStruct((NH, WCout), jnp.float32),
        compiler_params=cp,
    )(h2, sc2, sh2)

    out_nhwc = out_fold.reshape(N, H, W, cout)
    return jnp.transpose(out_nhwc, (0, 3, 1, 2))                   # NHWC -> NCHW


# --------------------------------------------------------------------------
# Params / reference / test
# --------------------------------------------------------------------------
def _bf16_exact(a):
    # round to the bf16 grid so MXU bf16 products are exact (tight comparison)
    return a.astype(jnp.bfloat16).astype(jnp.float32)


def init_params(key, in_ch, mid_ch, out_ch):
    cin = in_ch + mid_ch
    ks = jax.random.split(key, 8)
    w1 = _bf16_exact(jax.random.normal(ks[0], (cin, mid_ch)) / np.sqrt(cin))
    b1 = _bf16_exact(0.1 * jax.random.normal(ks[1], (1, mid_ch)))
    g1 = _bf16_exact(1.0 + 0.1 * jax.random.normal(ks[2], (1, mid_ch)))
    bt1 = _bf16_exact(0.1 * jax.random.normal(ks[3], (1, mid_ch)))
    w2 = _bf16_exact(jax.random.normal(ks[4], (3, 3, mid_ch, out_ch)) / np.sqrt(9 * mid_ch))
    b2 = _bf16_exact(0.1 * jax.random.normal(ks[5], (1, out_ch)))
    g2 = _bf16_exact(1.0 + 0.1 * jax.random.normal(ks[6], (1, out_ch)))
    bt2 = _bf16_exact(0.1 * jax.random.normal(ks[7], (1, out_ch)))
    return dict(w1=w1, b1=b1, g1=g1, bt1=bt1, w2=w2, b2=b2, g2=g2, bt2=bt2)


def reference_forward(x_nchw, params):
    """Plain-JAX reference with identical math (NHWC internally, f32)."""
    x = jnp.transpose(x_nchw, (0, 2, 3, 1)).astype(jnp.float32)
    cin, mid = params["w1"].shape
    cout = params["w2"].shape[3]

    h1 = jax.lax.conv_general_dilated(
        x, params["w1"].reshape(1, 1, cin, mid), (1, 1), "SAME",
        dimension_numbers=("NHWC", "HWIO", "NHWC"))
    h1 = h1 + params["b1"].reshape(1, 1, 1, mid)
    mu = jnp.mean(h1, axis=(0, 1, 2), keepdims=True)
    var = jnp.mean((h1 - mu) ** 2, axis=(0, 1, 2), keepdims=True)
    h1 = (h1 - mu) * jax.lax.rsqrt(var + EPS) * params["g1"].reshape(1, 1, 1, mid) \
         + params["bt1"].reshape(1, 1, 1, mid)
    h1 = jnp.maximum(h1, 0.0)

    h2 = jax.lax.conv_general_dilated(
        h1, params["w2"], (1, 1), "SAME",
        dimension_numbers=("NHWC", "HWIO", "NHWC"))
    h2 = h2 + params["b2"].reshape(1, 1, 1, cout)
    mu = jnp.mean(h2, axis=(0, 1, 2), keepdims=True)
    var = jnp.mean((h2 - mu) ** 2, axis=(0, 1, 2), keepdims=True)
    h2 = (h2 - mu) * jax.lax.rsqrt(var + EPS) * params["g2"].reshape(1, 1, 1, cout) \
         + params["bt2"].reshape(1, 1, 1, cout)
    h2 = jnp.maximum(h2, 0.0)
    return jnp.transpose(h2, (0, 3, 1, 2))


if __name__ == "__main__":
    in_ch, mid_ch, out_ch = 4, 4, 8
    N, H, W = 2, 16, 16

    key = jax.random.PRNGKey(0)
    kx, kp = jax.random.split(key)
    x = _bf16_exact(jax.random.normal(kx, (N, in_ch + mid_ch, H, W), jnp.float32))
    params = init_params(kp, in_ch, mid_ch, out_ch)

    out = double_conv_forward(x, params)
    jax.block_until_ready(out)

    assert out.shape == (N, out_ch, H, W)
    assert bool(jnp.all(jnp.isfinite(out)))

    ref = reference_forward(x, params)
    np.testing.assert_allclose(np.asarray(out), np.asarray(ref), atol=2e-2, rtol=2e-2)

    print("KERNEL_OK")
</pallas_src>

<mosaic_0001>
module attributes {stable_mosaic.version = 11 : i64} {
  func.func @_conv1_kernel(%arg0: i32, %arg1: memref<16x128xf32, #tpu.memory_space<vmem>>, %arg2: memref<128x64xbf16, #tpu.memory_space<vmem>>, %arg3: memref<1x64xf32, #tpu.memory_space<vmem>>, %arg4: memref<16x64xf32, #tpu.memory_space<vmem>>, %arg5: memref<1x2x64xf32, #tpu.memory_space<vmem>>) attributes {dimension_semantics = [#tpu.dimension_semantics<parallel>], iteration_bounds = array<i64: 2>, scalar_prefetch = 0 : i64, scratch_operands = 0 : i64, tpu.core_type = #tpu.core_type<tc>, window_params = [{transform_indices = @transform_0, window_bounds = array<i64: 16, 128>}, {pipeline_mode = #tpu.pipeline_mode<synchronous>, transform_indices = @transform_1, window_bounds = array<i64: 128, 64>}, {pipeline_mode = #tpu.pipeline_mode<synchronous>, transform_indices = @transform_2, window_bounds = array<i64: 1, 64>}, {transform_indices = @transform_3, window_bounds = array<i64: 16, 64>}, {transform_indices = @transform_4, window_bounds = array<i64: 1, 2, 64>}]} {
    %c0 = arith.constant 0 : index
    %c0_0 = arith.constant 0 : index
    %0 = vector.load %arg1[%c0, %c0_0] : memref<16x128xf32, #tpu.memory_space<vmem>>, vector<16x128xf32>
    %1 = arith.truncf %0 : vector<16x128xf32> to vector<16x128xbf16>
    %c0_1 = arith.constant 0 : index
    %c0_2 = arith.constant 0 : index
    %2 = vector.load %arg2[%c0_1, %c0_2] : memref<128x64xbf16, #tpu.memory_space<vmem>>, vector<128x64xbf16>
    %cst = arith.constant dense<0.000000e+00> : vector<16x64xf32>
    %3 = tpu.matmul %1, %2, %cst {dimension_numbers = #tpu.dot_dimension_numbers<[1], [0], [0], [1], [0, 0, 1, 1], [], []>} : vector<16x128xbf16>, vector<128x64xbf16>, vector<16x64xf32> -> vector<16x64xf32>
    %c0_3 = arith.constant 0 : index
    %c0_4 = arith.constant 0 : index
    %4 = vector.load %arg3[%c0_3, %c0_4] : memref<1x64xf32, #tpu.memory_space<vmem>>, vector<1x64xf32>
    %5 = vector.broadcast %4 : vector<1x64xf32> to vector<16x64xf32>
    %6 = arith.addf %3, %5 : vector<16x64xf32>
    %c0_5 = arith.constant 0 : index
    %c0_6 = arith.constant 0 : index
    %7 = vector.load %arg4[%c0_5, %c0_6] : memref<16x64xf32, #tpu.memory_space<vmem>>, vector<16x64xf32>
    tpu.vector_store %arg4[%c0_5, %c0_6], %6 {strides = array<i32>} : memref<16x64xf32, #tpu.memory_space<vmem>>, vector<16x64xf32>,
    %cst_7 = arith.constant dense<0.000000e+00> : vector<64xf32>
    %8 = vector.multi_reduction <add>, %6, %cst_7 [0] : vector<16x64xf32> to vector<64xf32>
    %9 = vector.shape_cast %8 : vector<64xf32> to vector<1x64xf32>
    %10 = arith.mulf %6, %6 : vector<16x64xf32>
    %cst_8 = arith.constant dense<0.000000e+00> : vector<64xf32>
    %11 = vector.multi_reduction <add>, %10, %cst_8 [0] : vector<16x64xf32> to vector<64xf32>
    %12 = vector.shape_cast %11 : vector<64xf32> to vector<1x64xf32>
    %13 = tpu.concatenate %9, %12 in 0 : vector<1x64xf32>, vector<1x64xf32> -> vector<2x64xf32>
    %14 = vector.shape_cast %13 : vector<2x64xf32> to vector<1x2x64xf32>
    %c0_9 = arith.constant 0 : index
    %c0_10 = arith.constant 0 : index
    %c0_11 = arith.constant 0 : index
    %15 = vector.load %arg5[%c0_9, %c0_10, %c0_11] : memref<1x2x64xf32, #tpu.memory_space<vmem>>, vector<1x2x64xf32>
    tpu.vector_store %arg5[%c0_9, %c0_10, %c0_11], %14 {strides = array<i32>} : memref<1x2x64xf32, #tpu.memory_space<vmem>>, vector<1x2x64xf32>,
    return
  }
  func.func @transform_0(%arg0: i32) -> (i32, i32) {
    %c0_i32 = arith.constant 0 : i32
    %c0_i32_0 = arith.constant 0 : i32
    return %arg0, %c0_i32 : i32, i32
  }
  func.func @transform_1(%arg0: i32) -> (i32, i32) {
    %c0_i32 = arith.constant 0 : i32
    %c0_i32_0 = arith.constant 0 : i32
    %c0_i32_1 = arith.constant 0 : i32
    return %c0_i32, %c0_i32_0 : i32, i32
  }
  func.func @transform_2(%arg0: i32) -> (i32, i32) {
    %c0_i32 = arith.constant 0 : i32
    %c0_i32_0 = arith.constant 0 : i32
    %c0_i32_1 = arith.constant 0 : i32
    return %c0_i32, %c0_i32_0 : i32, i32
  }
  func.func @transform_3(%arg0: i32) -> (i32, i32) {
    %c0_i32 = arith.constant 0 : i32
    %c0_i32_0 = arith.constant 0 : i32
    return %arg0, %c0_i32 : i32, i32
  }
  func.func @transform_4(%arg0: i32) -> (i32, i32, i32) {
    %c0_i32 = arith.constant 0 : i32
    %c0_i32_0 = arith.constant 0 : i32
    %c0_i32_1 = arith.constant 0 : i32
    return %arg0, %c0_i32, %c0_i32_0 : i32, i32, i32
  }
}

</mosaic_0001>

<llo_original>
// kernel: tpu_custom_call.1
$region0: #{tpu_custom_call.1}
  #allocation0 [shape = 'u32[]', space=smem, size = 0x4, offset = 0x4, fixed_abs, tag = 'smem constant byte address 0x4 - core index']
  #allocation1 [shape = 'u32[144,128]{1,0:T(1,128)}', space=vmem, size = 0x12000, scoped, tag = 'internal scratch']
  %s0 = inlined_call_operand.vmem [shape: f32[32,128], index: 0, kind: input, shape index: {}]
  %s1 = inlined_call_operand.vmem [shape: bf16[128,64], index: 1, kind: input, shape index: {}]
  %s2 = inlined_call_operand.vmem [shape: f32[1,64], index: 2, kind: input, shape index: {}]
  %s3 = inlined_call_operand.hbm [shape: f32[32,64], index: 3, kind: output, shape index: {0}]
  %s4 = inlined_call_operand.hbm [shape: f32[2,2,64], index: 4, kind: output, shape index: {1}]
  %5 = xla_tuple %s3, %s4
  %s6 = sld [smem:[#allocation0]]
  $region53: #{tpu_custom_call.1} parent=0
    _
  %s8 = ssub.s32 1, %s6
  %s9 = scalar_select 0, %s8, %s6
  $region1: #{tpu_custom_call.1} parent=0
    #allocation2 [shape = 'u8[16384]{0}', space=vmem, size = 0x4000, scoped, tag = 'output window, operand 0']
    #allocation3 [shape = 's32[2]{0}', space=sflag, size = 0x8, scoped, tag = 'scoped memory for tpu_custom_call.1']
    #allocation4 [shape = 'u8[2048]{0}', space=vmem, size = 0x800, scoped, tag = 'output window, operand 1']
    #allocation5 [shape = 's32[2]{0}', space=sflag, size = 0x8, scoped, tag = 'scoped memory for tpu_custom_call.1']
    %10 = vsyncpa [#allocation3], 0
    %s11 = scalar_lea.sflag [#allocation3], 1
    %12 = vsyncpa %s11, 0
    %13 = vsyncpa [#allocation5], 0
    %s14 = scalar_lea.sflag [#allocation5], 1
    %15 = vsyncpa %s14, 0
    loop: start=0, step=1, limit=4
    $region2: #{tpu_custom_call.1} parent=1 // loop_pre_header
      _
    $region3: #{tpu_custom_call.1} parent=1 // loop_header
      %s17 = sphi 0, %s21
      %p18 = scmp.ge.s32.totalorder %s17, 4
      %s27 = sphi 0, %s29
      %s30 = sphi 0, %s27
      %s31 = sphi 0, %s30
      %s47 = sphi 0, %s31
      %s51 = sphi 0, %s51
      %s53 = sphi 0, %s51
      %s54 = sphi 0, %s53
      %s68 = sphi 0, %s54
      %s72 = sphi 0, %s72
      %s74 = sphi 0, %s72
      %s75 = sphi 0, %s74
      %s89 = sphi 0, %s75
      %s95 = sphi 0, %s97
      %s98 = sphi 0, %s95
      %s99 = sphi 0, %s98
      %s115 = sphi 0, %s99
      %s121 = sphi 0, %s123
      %s124 = sphi 0, %s121
      %s125 = sphi 0, %s124
      %s141 = sphi 0, %s125
    $region4: #{tpu_custom_call.1} parent=1 // loop_header_branch
      %20 = sbr.rel (%p18) target = $region8
    $region5: #{tpu_custom_call.1} parent=1 // loop_body
      %s22 = ssub.s32 %s17, 1
      %s23 = ssub.s32 %s17, 2
      %s24 = sadd.s32 %s17, 1
      %s25 = ssub.s32 %s17, %s24
      %p26 = scmp.eq.s32.totalorder %s25, 0
      %s28 = sadd.s32 %s27, 1
      %s29 = scalar_select %p26, %s27, %s28
      %p32 = pneg %p26
      %p33 = scmp.eq.s32.totalorder %s17, 1
      %p34 = por %p32, %p33
      %p35 = scmp.ne.s32.totalorder %s27, %s30
      %p36 = scmp.eq.s32.totalorder %s17, 0
      %p37 = por %p35, %p36
      %p38 = scmp.ne.s32.totalorder %s27, %s30
      %p39 = scmp.eq.s32.totalorder %s22, 1
      %p40 = por %p38, %p39
      %p41 = scmp.ne.s32.totalorder %s30, %s31
      %p42 = scmp.eq.s32.totalorder %s22, 0
      %p43 = por %p41, %p42
      %p44 = scmp.ne.s32.totalorder %s30, %s31
      %p45 = scmp.eq.s32.totalorder %s23, 1
      %p46 = por %p44, %p45
      %p48 = scmp.ne.s32.totalorder %s31, %s47
      %p49 = scmp.eq.s32.totalorder %s23, 0
      %p50 = por %p48, %p49
      %s52 = sadd.s32 %s51, 1
      %p55 = scmp.eq.s32.totalorder %s17, 1
      %p56 = scmp.ne.s32.totalorder %s51, %s53
      %p57 = scmp.eq.s32.totalorder %s17, 0
      %p58 = por %p56, %p57
      %p59 = scmp.ne.s32.totalorder %s51, %s53
      %p60 = scmp.eq.s32.totalorder %s22, 1
      %p61 = por %p59, %p60
      %p62 = scmp.ne.s32.totalorder %s53, %s54
      %p63 = scmp.eq.s32.totalorder %s22, 0
      %p64 = por %p62, %p63
      %p65 = scmp.ne.s32.totalorder %s53, %s54
      %p66 = scmp.eq.s32.totalorder %s23, 1
      %p67 = por %p65, %p66
      %p69 = scmp.ne.s32.totalorder %s54, %s68
      %p70 = scmp.eq.s32.totalorder %s23, 0
      %p71 = por %p69, %p70
      %s73 = sadd.s32 %s72, 1
      %p76 = scmp.eq.s32.totalorder %s17, 1
      %p77 = scmp.ne.s32.totalorder %s72, %s74
      %p78 = scmp.eq.s32.totalorder %s17, 0
      %p79 = por %p77, %p78
      %p80 = scmp.ne.s32.totalorder %s72, %s74
      %p81 = scmp.eq.s32.totalorder %s22, 1
      %p82 = por %p80, %p81
      %p83 = scmp.ne.s32.totalorder %s74, %s75
      %p84 = scmp.eq.s32.totalorder %s22, 0
      %p85 = por %p83, %p84
      %p86 = scmp.ne.s32.totalorder %s74, %s75
      %p87 = scmp.eq.s32.totalorder %s23, 1
      %p88 = por %p86, %p87
      %p90 = scmp.ne.s32.totalorder %s75, %s89
      %p91 = scmp.eq.s32.totalorder %s23, 0
      %p92 = por %p90, %p91
      %s93 = ssub.s32 %s17, %s24
      %p94 = scmp.eq.s32.totalorder %s93, 0
      %s96 = sadd.s32 %s95, 1
      %s97 = scalar_select %p94, %s95, %s96
      %p100 = pneg %p94
      %p101 = scmp.eq.s32.totalorder %s17, 1
      %p102 = por %p100, %p101
      %p103 = scmp.ne.s32.totalorder %s95, %s98
      %p104 = scmp.eq.s32.totalorder %s17, 0
      %p105 = por %p103, %p104
      %p106 = scmp.ne.s32.totalorder %s95, %s98
      %p107 = scmp.eq.s32.totalorder %s22, 1
      %p108 = por %p106, %p107
      %p109 = scmp.ne.s32.totalorder %s98, %s99
      %p110 = scmp.eq.s32.totalorder %s22, 0
      %p111 = por %p109, %p110
      %p112 = scmp.ne.s32.totalorder %s98, %s99
      %p113 = scmp.eq.s32.totalorder %s23, 1
      %p114 = por %p112, %p113
      %p116 = scmp.ne.s32.totalorder %s99, %s115
      %p117 = scmp.eq.s32.totalorder %s23, 0
      %p118 = por %p116, %p117
      %s119 = ssub.s32 %s17, %s24
      %p120 = scmp.eq.s32.totalorder %s119, 0
      %s122 = sadd.s32 %s121, 1
      %s123 = scalar_select %p120, %s121, %s122
      %p126 = pneg %p120
      %p127 = scmp.eq.s32.totalorder %s17, 1
      %p128 = por %p126, %p127
      %p129 = scmp.ne.s32.totalorder %s121, %s124
      %p130 = scmp.eq.s32.totalorder %s17, 0
      %p131 = por %p129, %p130
      %p132 = scmp.ne.s32.totalorder %s121, %s124
      %p133 = scmp.eq.s32.totalorder %s22, 1
      %p134 = por %p132, %p133
      %p135 = scmp.ne.s32.totalorder %s124, %s125
      %p136 = scmp.eq.s32.totalorder %s22, 0
      %p137 = por %p135, %p136
      %p138 = scmp.ne.s32.totalorder %s124, %s125
      %p139 = scmp.eq.s32.totalorder %s23, 1
      %p140 = por %p138, %p139
      %p142 = scmp.ne.s32.totalorder %s125, %s141
      %p143 = scmp.eq.s32.totalorder %s23, 0
      %p144 = por %p142, %p143
      %p145 = scmp.le.s32.totalorder 1, %s17
      %p146 = scmp.lt.s32.totalorder %s17, 3
      %p147 = pnand %p145, %p146
      %p148 = pneg %p147
      // Predicated region
      $region9: #{tpu_custom_call.1} parent=5 // pred_check
        _
      $region10: #{tpu_custom_call.1} parent=5 // pred_check_branch
        %150 = sbr.rel (%p147) target = $region12
      $region11: #{tpu_custom_call.1} parent=5 // pred_region
        %s151 = ssub.s32 %s17, 1
        // Predicated region
        $region13: #{tpu_custom_call.1} parent=11 // pred_check
          %p152 = pneg %p64
        $region14: #{tpu_custom_call.1} parent=11 // pred_check_branch
          %154 = sbr.rel (%p152) target = $region16
        $region15: #{tpu_custom_call.1} parent=11 // pred_region
          _
        $region16: #{tpu_custom_call.1} parent=11 // pred_fallthru
          _
        // Predicated region
        $region17: #{tpu_custom_call.1} parent=11 // pred_check
          %p155 = pneg %p85
        $region18: #{tpu_custom_call.1} parent=11 // pred_check_branch
          %157 = sbr.rel (%p155) target = $region20
        $region19: #{tpu_custom_call.1} parent=11 // pred_region
          _
        $region20: #{tpu_custom_call.1} parent=11 // pred_fallthru
          _
      $region12: #{tpu_custom_call.1} parent=5 // pred_fallthru
        _
      %p158 = scmp.lt.s32.totalorder %s17, 2
      // Predicated region
      $region21: #{tpu_custom_call.1} parent=5 // pred_check
        %p159 = pneg %p158
      $region22: #{tpu_custom_call.1} parent=5 // pred_check_branch
        %161 = sbr.rel (%p159) target = $region24
      $region23: #{tpu_custom_call.1} parent=5 // pred_region
        // Predicated region
        $region25: #{tpu_custom_call.1} parent=23 // pred_check
          %p162 = pneg %p37
        $region26: #{tpu_custom_call.1} parent=23 // pred_check_branch
          %164 = sbr.rel (%p162) target = $region28
        $region27: #{tpu_custom_call.1} parent=23 // pred_region
          %s165 = smul.u32 2, %s17
          %p166 = scmp.lt.s32.totalorder %s165, 3
          %s167 = scalar_select %p166, %s165, 3
          %s168 = smul.addr %s167, 8
          %s169 = scalar_lea.vmem %s0, %s168
          %s170 = smul.u32 2, %s17
        $region28: #{tpu_custom_call.1} parent=23 // pred_fallthru
          _
      $region24: #{tpu_custom_call.1} parent=5 // pred_fallthru
        _
      %p171 = scmp.le.s32.totalorder 1, %s17
      %p172 = scmp.lt.s32.totalorder %s17, 3
      %p173 = pnand %p171, %p172
      %p174 = pneg %p173
      // Predicated region
      $region29: #{tpu_custom_call.1} parent=5 // pred_check
        _
      $region30: #{tpu_custom_call.1} parent=5 // pred_check_branch
        %176 = sbr.rel (%p173) target = $region32
      $region31: #{tpu_custom_call.1} parent=5 // pred_region
        %s177 = ssub.s32 %s17, 1
        %s178 = smul.u32 2, %s22
        %p179 = scmp.lt.s32.totalorder %s178, 3
        %s180 = scalar_select %p179, %s178, 3
        %s181 = smul.addr %s180, 8
        %s182 = scalar_lea.vmem %s0, %s181
        %p183 = pneg %p43
        %p184 = pneg %p40
        %p185 = pneg %p64
        %p186 = pneg %p61
        %p187 = pneg %p85
        %p188 = pneg %p82
        %p189 = pneg %p111
        %p190 = pneg %p108
        %s191 = sand.u32 %s98, 1
        %s192 = scalar_lea.sflag [#allocation3], %s191
        %s193 = sand.u32 %s98, 1
        %s194 = smul.addr %s193, 16
        %s195 = scalar_lea.vmem [#allocation2], %s194
        %p196 = pneg %p137
        %p197 = pneg %p134
        %s198 = sand.u32 %s124, 1
        %s199 = scalar_lea.sflag [#allocation5], %s198
        %s200 = sand.u32 %s124, 1
        %s201 = smul.addr %s200, 2
        %s202 = scalar_lea.vmem [#allocation4], %s201
        %s203 = smul.u32 2, %s22
        %p204 = scmp.lt.s32.totalorder %s203, 3
        %s205 = scalar_select %p204, %s203, 3
        %s206 = smul.addr %s205, 8
        %s207 = scalar_lea.vmem %s0, %s206
        %s208 = smul.u32 2, %s22
        %s209 = smul.u32 2, %s22
        %v211 = vld [vmem:[%s207] sm:$0xff]
        %v212 = vld [vmem:[%s207 + $0x8] sm:$0xff]
        %v213 = vpack.c.bf16 %v212, %v211
        %v214 = vld [vmem:[%s1] sm:$0xf]
        %v215 = vld [vmem:[%s1 + $0x4] sm:$0xf]
        %v216 = vld [vmem:[%s1 + $0x8] sm:$0xf]
        %v217 = vld [vmem:[%s1 + $0xc] sm:$0xf]
        %v218 = vld [vmem:[%s1 + $0x10] sm:$0xf]
        %v219 = vld [vmem:[%s1 + $0x14] sm:$0xf]
        %v220 = vld [vmem:[%s1 + $0x18] sm:$0xf]
        %v221 = vld [vmem:[%s1 + $0x1c] sm:$0xf]
        %v222 = vld [vmem:[%s1 + $0x20] sm:$0xf]
        %v223 = vld [vmem:[%s1 + $0x24] sm:$0xf]
        %v224 = vld [vmem:[%s1 + $0x28] sm:$0xf]
        %v225 = vld [vmem:[%s1 + $0x2c] sm:$0xf]
        %v226 = vld [vmem:[%s1 + $0x30] sm:$0xf]
        %v227 = vld [vmem:[%s1 + $0x34] sm:$0xf]
        %v228 = vld [vmem:[%s1 + $0x38] sm:$0xf]
        %v229 = vld [vmem:[%s1 + $0x3c] sm:$0xf]
        %v230 = vld [vmem:[%s2] sm:$0x1]
        %v232 = vlaneseq
        %v233 = vshrl.u32 %v232, 7
        %v234 = vsub.s32 0, %v233
        %v235 = vrot.slane %v230, %v234
        %v253 = vunpack.c.l.b16 %v214
        %v254 = vunpack.c.l.b16 %v215
        %v255 = vunpack.c.l.b16 %v216
        %v256 = vunpack.c.l.b16 %v217
        %v257 = vunpack.c.l.b16 %v218
        %v258 = vunpack.c.l.b16 %v219
        %v259 = vunpack.c.l.b16 %v220
        %v260 = vunpack.c.l.b16 %v221
        %v261 = vunpack.c.l.b16 %v222
        %v262 = vunpack.c.l.b16 %v223
        %v263 = vunpack.c.l.b16 %v224
        %v264 = vunpack.c.l.b16 %v225
        %v265 = vunpack.c.l.b16 %v226
        %v266 = vunpack.c.l.b16 %v227
        %v267 = vunpack.c.l.b16 %v228
        %v268 = vunpack.c.l.b16 %v229
        %v269 = vpack.c.b16 %v254, %v253
        %v270 = vpack.c.b16 %v256, %v255
        %v271 = vpack.c.b16 %v258, %v257
        %v272 = vpack.c.b16 %v260, %v259
        %v273 = vpack.c.b16 %v262, %v261
        %v274 = vpack.c.b16 %v264, %v263
        %v275 = vpack.c.b16 %v266, %v265
        %v276 = vpack.c.b16 %v268, %v267
        %285 = vmatprep.subr.bf16.mxu0 0
        %286 = vmatpush1.bf16.msra.mxu0 %v269
        %287 = vmatprep.subr.bf16.mxu0 0
        %288 = vmatpush1.bf16.msra.mxu0 %v270
        %289 = vmatprep.subr.bf16.mxu0 0
        %290 = vmatpush1.bf16.msra.mxu0 %v271
        %291 = vmatprep.subr.bf16.mxu0 0
        %292 = vmatpush1.bf16.msra.mxu0 %v272
        %293 = vmatprep.subr.bf16.mxu0 0
        %294 = vmatpush1.bf16.msra.mxu0 %v273
        %295 = vmatprep.subr.bf16.mxu0 0
        %296 = vmatpush1.bf16.msra.mxu0 %v274
        %297 = vmatprep.subr.bf16.mxu0 0
        %298 = vmatpush1.bf16.msra.mxu0 %v275
        %299 = vmatprep.subr.bf16.mxu0 0
        %300 = vmatpush1.bf16.msra.mxu0 %v276
        %301 = vmatprep.subr.bf16.mxu0 0
        %302 = vmatpush1.bf16.msra.mxu0 0
        %303 = vmatprep.subr.bf16.mxu0 0
        %304 = vmatpush1.bf16.msra.mxu0 0
        %305 = vmatprep.subr.bf16.mxu0 0
        %306 = vmatpush1.bf16.msra.mxu0 0
        %307 = vmatprep.subr.bf16.mxu0 0
        %308 = vmatpush1.bf16.msra.mxu0 0
        %309 = vmatprep.subr.bf16.mxu0 0
        %310 = vmatpush1.bf16.msra.mxu0 0
        %311 = vmatprep.subr.bf16.mxu0 0
        %312 = vmatpush1.bf16.msra.mxu0 0
        %313 = vmatprep.subr.bf16.mxu0 0
        %314 = vmatpush1.bf16.msra.mxu0 0
        %315 = vmatprep.subr.bf16.mxu0 0
        %316 = vmatpush1.bf16.msra.mxu0 0
        %317 = vmatprep.mubr.bf16.mxu0 0
        %318 = vmatmul.mubr.bf16.gmra.mrb[0].mxu0 %v213
        %v319 = vpop.f32.mrb[0].mxu0
        %v320 = vadd.f32 %v235, %v319
        %v321 = vpop.f32.mrb[0].mxu0
        %v322 = vpop.f32.mrb[0].mxu0
        %v323 = vadd.f32 %v235, %v322
        %v324 = vpop.f32.mrb[0].mxu0
        %325 = vdwg.mxu0
        %vm326 = vcmask 523264
        %327 = vst.msk [vmem:[%s195] sm:$0xff] %vm326, %v320
        %328 = vst.msk [vmem:[%s195 + $0x8] sm:$0xff] %vm326, %v323
        %v329 = vsel %vm326, %v320, 0.0
        %v330 = vsel %vm326, %v323, 0.0
        %v331 = vadd.f32 %v329, %v330
        %v332 = vrot.slane %v331, 4
        %v333 = vadd.f32 %v331, %v332
        %v334 = vrot.slane %v333, 2
        %v335 = vadd.f32 %v333, %v334
        %v336 = vrot.slane %v335, 1
        %v337 = vadd.f32 %v335, %v336
        %v338 = vmul.f32 %v320, %v320
        %v339 = vmul.f32 %v323, %v323
        %v340 = vsel %vm326, %v338, 0.0
        %v341 = vsel %vm326, %v339, 0.0
        %v342 = vadd.f32 %v340, %v341
        %v343 = vrot.slane %v342, 4
        %v344 = vadd.f32 %v342, %v343
        %v345 = vrot.slane %v344, 2
        %v346 = vadd.f32 %v344, %v345
        %v347 = vrot.slane %v346, 1
        %v348 = vadd.f32 %v346, %v347
        %vm349 = vcmask 1040384
        %v350 = vsel %vm349, %v337, %v348
        %vm351 = vcmask 517120
        %352 = vst.msk [vmem:[%s202] sm:$0x3] %vm351, %v350
        %s353 = sand.u32 %s98, 1
        %s354 = scalar_lea.sflag [#allocation3], %s353
        %s355 = sand.u32 %s98, 1
        %s356 = smul.addr %s355, 16
        %s357 = scalar_lea.vmem [#allocation2], %s356
        %s358 = sand.u32 %s124, 1
        %s359 = scalar_lea.sflag [#allocation5], %s358
        %s360 = sand.u32 %s124, 1
        %s361 = smul.addr %s360, 2
        %s362 = scalar_lea.vmem [#allocation4], %s361
        // Predicated region
        $region33: #{tpu_custom_call.1} parent=31 // pred_check
          %p363 = pneg %p108
        $region34: #{tpu_custom_call.1} parent=31 // pred_check_branch
          %365 = sbr.rel (%p363) target = $region36
        $region35: #{tpu_custom_call.1} parent=31 // pred_region
          %s366 = smul.u32 2, %s22
          %s368 = ssub.s32 256, 256
          %369 = vsyncadd %s354, %s368
          %s370 = smul.addr %s366, 128
          %s371 = scalar_lea.hbm %s3, %s370
          %s372 = sshll.u32 %s357, 4
          %s373 = int_to_ptr.vmem [resolvable:$true] %s372
          %378 = dma.vmem_to_hbm [thread:$0]  %s373, 256, %s371, %s354, 128, 128, 8
        $region36: #{tpu_custom_call.1} parent=31 // pred_fallthru
          _
        // Predicated region
        $region37: #{tpu_custom_call.1} parent=31 // pred_check
          %p379 = pneg %p134
        $region38: #{tpu_custom_call.1} parent=31 // pred_check_branch
          %381 = sbr.rel (%p379) target = $region40
        $region39: #{tpu_custom_call.1} parent=31 // pred_region
          %s383 = ssub.s32 32, 32
          %384 = vsyncadd %s359, %s383
          %s385 = smul.addr %s22, 32
          %s386 = scalar_lea.hbm %s4, %s385
          %s388 = sshll.u32 %s362, 4
          %s389 = int_to_ptr.vmem [resolvable:$true] %s388
          %391 = dma.vmem_to_hbm [thread:$0]  %s389, 32, %s386, %s359
        $region40: #{tpu_custom_call.1} parent=31 // pred_fallthru
          _
      $region32: #{tpu_custom_call.1} parent=5 // pred_fallthru
        _
      %p392 = scmp.le.s32.totalorder 2, %s17
      // Predicated region
      $region41: #{tpu_custom_call.1} parent=5 // pred_check
        %p393 = pneg %p392
      $region42: #{tpu_custom_call.1} parent=5 // pred_check_branch
        %395 = sbr.rel (%p393) target = $region44
      $region43: #{tpu_custom_call.1} parent=5 // pred_region
        %s396 = ssub.s32 %s17, 2
        // Predicated region
        $region45: #{tpu_custom_call.1} parent=43 // pred_check
          %p397 = pneg %p114
        $region46: #{tpu_custom_call.1} parent=43 // pred_check_branch
          %399 = sbr.rel (%p397) target = $region48
        $region47: #{tpu_custom_call.1} parent=43 // pred_region
          %s400 = sand.u32 %s99, 1
          %s401 = scalar_lea.sflag [#allocation3], %s400
          %s402 = sand.u32 %s99, 1
          %s403 = smul.addr %s402, 16
          %s404 = scalar_lea.vmem [#allocation2], %s403
          %405 = dma.done %s401, 256
        $region48: #{tpu_custom_call.1} parent=43 // pred_fallthru
          _
        // Predicated region
        $region49: #{tpu_custom_call.1} parent=43 // pred_check
          %p406 = pneg %p140
        $region50: #{tpu_custom_call.1} parent=43 // pred_check_branch
          %408 = sbr.rel (%p406) target = $region52
        $region51: #{tpu_custom_call.1} parent=43 // pred_region
          %s409 = sand.u32 %s125, 1
          %s410 = scalar_lea.sflag [#allocation5], %s409
          %s411 = sand.u32 %s125, 1
          %s412 = smul.addr %s411, 2
          %s413 = scalar_lea.vmem [#allocation4], %s412
          %414 = dma.done %s410, 32
        $region52: #{tpu_custom_call.1} parent=43 // pred_fallthru
          _
      $region44: #{tpu_custom_call.1} parent=5 // pred_fallthru
        _
    $region6: #{tpu_custom_call.1} parent=1 // loop_footer
      %s21 = sadd.s32 1, %s17
    $region7: #{tpu_custom_call.1} parent=1 // loop_footer_branch
      %16 = sbr.rel target = $region3
    $region8: #{tpu_custom_call.1} parent=1 // loop_exit
      _
    %415 = vsyncpa [#allocation3], 1
    %s416 = scalar_lea.sflag [#allocation3], 1
    %417 = vsyncpa %s416, 1
    %418 = vsyncpa [#allocation5], 1
    %s419 = scalar_lea.sflag [#allocation5], 1
    %420 = vsyncpa %s419, 1

</llo_original>
